<compile_context>
chip_gen: v5e
topology: v5e:2x2
jax: 0.10.0
libtpu: 0.0.40
codegen_flags: <defaults>
</compile_context>

<pallas_src>
import functools

import numpy as np
import jax
import jax.numpy as jnp
from jax.experimental import pallas as pl
from jax.experimental.pallas import tpu as pltpu

EPS = 1e-5


# --------------------------------- kernels ---------------------------------
def _stage1_kernel(x_ref, w_ref, y1_ref, ys_ref, st_ref, *, H, WCo):
    """conv1 (3x3) + 1x1 shortcut in ONE matmul; per-block BN1/BNs partial stats."""
    x = x_ref[...]                                              # (TR, W*Cin) bf16
    TR = x.shape[0]
    # lanes of t: [dy=-1 tap | dy=0 tap | dy=+1 tap | shortcut], each WCo wide
    t = jnp.dot(x, w_ref[...], preferred_element_type=jnp.float32)   # (TR, 4*WCo)
    t0 = t[:, 0 * WCo:1 * WCo]
    t1 = t[:, 1 * WCo:2 * WCo]
    t2 = t[:, 2 * WCo:3 * WCo]
    ts = t[:, 3 * WCo:4 * WCo]

    # hoisted image-border masks (block rows are whole images, so r % H is exact)
    row = jax.lax.broadcasted_iota(jnp.int32, (TR, 1), 0) % H
    y1p = t1
    y1p = y1p + jnp.where(row > 0, pltpu.roll(t0, shift=1, axis=0), 0.0)       # t0[r-1]
    y1p = y1p + jnp.where(row < H - 1, pltpu.roll(t2, shift=TR - 1, axis=0), 0.0)  # t2[r+1]

    y1_ref[...] = y1p
    ys_ref[...] = ts
    st_ref[...] = jnp.concatenate(
        [jnp.sum(y1p, axis=0, keepdims=True),
         jnp.sum(y1p * y1p, axis=0, keepdims=True),
         jnp.sum(ts, axis=0, keepdims=True),
         jnp.sum(ts * ts, axis=0, keepdims=True)], axis=1).reshape(1, 1, 4 * WCo)


def _stage2_kernel(y1p_ref, sc1_ref, sh1_ref, w_ref, y2_ref, st_ref, *, H, WCo):
    """BN1 (precomputed scale/shift) + ReLU + conv2 (3x3) in one matmul; BN2 stats."""
    y1 = jnp.maximum(y1p_ref[...] * sc1_ref[...] + sh1_ref[...], 0.0)   # (TR, WCo) f32
    TR = y1.shape[0]
    t = jnp.dot(y1.astype(jnp.bfloat16), w_ref[...],
                preferred_element_type=jnp.float32)                     # (TR, 3*WCo)
    t0 = t[:, 0 * WCo:1 * WCo]
    t1 = t[:, 1 * WCo:2 * WCo]
    t2 = t[:, 2 * WCo:3 * WCo]

    row = jax.lax.broadcasted_iota(jnp.int32, (TR, 1), 0) % H
    y2p = t1
    y2p = y2p + jnp.where(row > 0, pltpu.roll(t0, shift=1, axis=0), 0.0)
    y2p = y2p + jnp.where(row < H - 1, pltpu.roll(t2, shift=TR - 1, axis=0), 0.0)

    y2_ref[...] = y2p
    st_ref[...] = jnp.concatenate(
        [jnp.sum(y2p, axis=0, keepdims=True),
         jnp.sum(y2p * y2p, axis=0, keepdims=True)], axis=1).reshape(1, 1, 2 * WCo)


def _stage3_kernel(y2p_ref, ysp_ref, sc2_ref, sh2_ref, scs_ref, shs_ref, out_ref):
    """BN2 + shortcut BN + add + ReLU (pure VPU, lane-dense unmasked store)."""
    y2 = y2p_ref[...] * sc2_ref[...] + sh2_ref[...]
    ys = ysp_ref[...] * scs_ref[...] + shs_ref[...]
    out_ref[...] = jnp.maximum(y2 + ys, 0.0)


# ----------------------- host-side weight repacking (runs ONCE) -----------------------
def pack_params(params, W):
    """Fold dx taps into shifted block-diagonal (W*Ci, W*Co) matrices and stack the
    dy taps (+ fused 1x1 shortcut) along the matmul N dimension. Pure numpy."""
    w1 = np.asarray(params["w1"], np.float32)       # (3,3,Cin,Cout) HWIO
    w2 = np.asarray(params["w2"], np.float32)       # (3,3,Cout,Cout)
    ws = np.asarray(params["ws"], np.float32)       # (Cin,Cout)
    Cin, Cout = w1.shape[2], w1.shape[3]
    WCi, WCo = W * Cin, W * Cout

    def row_fold(w, Ci, Co):
        out = np.zeros((3, W * Ci, W * Co), np.float32)
        for kh in range(3):
            for kw in range(3):
                for j in range(W):
                    jp = j + kw - 1
                    if 0 <= jp < W:
                        out[kh, jp * Ci:(jp + 1) * Ci, j * Co:(j + 1) * Co] = w[kh, kw]
        return out

    wrow1 = row_fold(w1, Cin, Cout)                 # (3, WCi, WCo)
    wrow2 = row_fold(w2, Cout, Cout)                # (3, WCo, WCo)
    ws_bd = np.zeros((WCi, WCo), np.float32)
    for j in range(W):
        ws_bd[j * Cin:(j + 1) * Cin, j * Cout:(j + 1) * Cout] = ws

    # stage 1: lanes = [dy=-1 | dy=0 | dy=+1 | shortcut]    -> (WCi, 4*WCo)
    w1pack = np.concatenate([wrow1[0], wrow1[1], wrow1[2], ws_bd], axis=1)
    # stage 2: lanes = [dy=-1 | dy=0 | dy=+1]               -> (WCo, 3*WCo)
    w2pack = np.concatenate([wrow2[0], wrow2[1], wrow2[2]], axis=1)

    flat = lambda v: jnp.asarray(np.asarray(v, np.float32).reshape(-1))
    return {
        "w1pack": jnp.asarray(w1pack, jnp.bfloat16),
        "w2pack": jnp.asarray(w2pack, jnp.bfloat16),
        "g1": flat(params["g1"]), "be1": flat(params["be1"]),
        "g2": flat(params["g2"]), "be2": flat(params["be2"]),
        "gs": flat(params["gs"]), "bes": flat(params["bes"]),
        "Cin": Cin, "Cout": Cout,
        # NOTE: conv biases b1/b2/bs deliberately omitted -- training-mode BN cancels them.
    }


def _finalize_bn(s1, s2, gamma, beta, count, W, Cout):
    """Tiny XLA reduction: cross-W lane-group pooling + scale/shift per channel."""
    s1 = s1.reshape(W, Cout).sum(axis=0)
    s2 = s2.reshape(W, Cout).sum(axis=0)
    mean = s1 / count
    var = s2 / count - mean * mean          # biased, training-mode (one-pass formula)
    scale = gamma * jax.lax.rsqrt(var + EPS)
    shift = beta - mean * scale
    tile = lambda v: jnp.tile(v.reshape(1, Cout), (1, W))   # lane layout (1, W*Cout)
    return tile(scale), tile(shift)


# ----------------------------------- forward -----------------------------------
def residual_block(x_nhwc, packed, *, images_per_block=1):
    N, H, W, Cin = x_nhwc.shape
    Cout = packed["Cout"]
    WCi, WCo = W * Cin, W * Cout
    assert N % images_per_block == 0
    TR = images_per_block * H              # block rows = whole images (roll+mask stays valid)
    NB = (N * H) // TR
    assert TR % 8 == 0 or NB == 1
    count = float(N * H * W)

    x2d = x_nhwc.reshape(N * H, WCi).astype(jnp.bfloat16)   # lane-dense, half the DMA bytes

    cp = pltpu.CompilerParams(dimension_semantics=("parallel",),
                              vmem_limit_bytes=32 * 1024 * 1024)
    row_blk = lambda cols: pl.BlockSpec((TR, cols), lambda i: (i, 0))
    full2d = lambda r, c: pl.BlockSpec((r, c), lambda i: (0, 0))
    stat_blk = lambda cols: pl.BlockSpec((1, 1, cols), lambda i: (i, 0, 0))

    # ---- stage 1: conv1 + shortcut, per-block BN1/BNs stats ----
    y1p, ysp, st1 = pl.pallas_call(
        functools.partial(_stage1_kernel, H=H, WCo=WCo),
        grid=(NB,),
        in_specs=[row_blk(WCi), full2d(WCi, 4 * WCo)],
        out_specs=[row_blk(WCo), row_blk(WCo), stat_blk(4 * WCo)],
        out_shape=[jax.ShapeDtypeStruct((N * H, WCo), jnp.float32),
                   jax.ShapeDtypeStruct((N * H, WCo), jnp.float32),
                   jax.ShapeDtypeStruct((NB, 1, 4 * WCo), jnp.float32)],
        compiler_params=cp,
    )(x2d, packed["w1pack"])

    st1 = st1.reshape(NB, 4, WCo).sum(axis=0)
    sc1, sh1 = _finalize_bn(st1[0], st1[1], packed["g1"], packed["be1"], count, W, Cout)
    scs, shs = _finalize_bn(st1[2], st1[3], packed["gs"], packed["bes"], count, W, Cout)

    # ---- stage 2: BN1 + ReLU + conv2, per-block BN2 stats ----
    y2p, st2 = pl.pallas_call(
        functools.partial(_stage2_kernel, H=H, WCo=WCo),
        grid=(NB,),
        in_specs=[row_blk(WCo), full2d(1, WCo), full2d(1, WCo), full2d(WCo, 3 * WCo)],
        out_specs=[row_blk(WCo), stat_blk(2 * WCo)],
        out_shape=[jax.ShapeDtypeStruct((N * H, WCo), jnp.float32),
                   jax.ShapeDtypeStruct((NB, 1, 2 * WCo), jnp.float32)],
        compiler_params=cp,
    )(y1p, sc1, sh1, packed["w2pack"])

    st2 = st2.reshape(NB, 2, WCo).sum(axis=0)
    sc2, sh2 = _finalize_bn(st2[0], st2[1], packed["g2"], packed["be2"], count, W, Cout)

    # ---- stage 3: BN2 + shortcut BN + add + ReLU ----
    out2d = pl.pallas_call(
        _stage3_kernel,
        grid=(NB,),
        in_specs=[row_blk(WCo), row_blk(WCo),
                  full2d(1, WCo), full2d(1, WCo), full2d(1, WCo), full2d(1, WCo)],
        out_specs=row_blk(WCo),
        out_shape=jax.ShapeDtypeStruct((N * H, WCo), jnp.float32),
        compiler_params=cp,
    )(y2p, ysp, sc2, sh2, scs, shs)

    return out2d.reshape(N, H, W, Cout)


# ------------------------- pure-JAX reference (for checking) -------------------------
def _conv_ref(x, w_hwio, b, pad):
    y = jax.lax.conv_general_dilated(
        x, w_hwio, window_strides=(1, 1), padding=pad,
        dimension_numbers=("NHWC", "HWIO", "NHWC"))
    return y + b.reshape(1, 1, 1, -1)


def _bn_ref(y, g, be):
    mean = y.mean(axis=(0, 1, 2), keepdims=True)
    var = ((y - mean) ** 2).mean(axis=(0, 1, 2), keepdims=True)
    return (y - mean) * jax.lax.rsqrt(var + EPS) * g.reshape(1, 1, 1, -1) + be.reshape(1, 1, 1, -1)


def residual_block_ref(x_nhwc, p):
    y1 = jnp.maximum(_bn_ref(_conv_ref(x_nhwc, p["w1"], p["b1"], ((1, 1), (1, 1))), p["g1"], p["be1"]), 0.0)
    y2 = _bn_ref(_conv_ref(y1, p["w2"], p["b2"], ((1, 1), (1, 1))), p["g2"], p["be2"])
    ys = _bn_ref(_conv_ref(x_nhwc, p["ws"].reshape(1, 1, *p["ws"].shape), p["bs"], ((0, 0), (0, 0))),
                 p["gs"], p["bes"])
    return jnp.maximum(y2 + ys, 0.0)


# ------------------------------------- main -----------------------------------------
if __name__ == "__main__":
    in_c, out_c = 4, 8
    N, H, W = 2, 16, 16

    key = jax.random.PRNGKey(0)
    ks = jax.random.split(key, 14)
    f32 = jnp.float32
    params = {
        # conv1: 3x3, in_c -> out_c (HWIO) + bias
        "w1": 0.2 * jax.random.normal(ks[0], (3, 3, in_c, out_c), f32),
        "b1": 0.1 * jax.random.normal(ks[1], (1, out_c), f32),
        "g1": 1.0 + 0.1 * jax.random.normal(ks[2], (1, out_c), f32),
        "be1": 0.1 * jax.random.normal(ks[3], (1, out_c), f32),
        # conv2: 3x3, out_c -> out_c + bias
        "w2": 0.2 * jax.random.normal(ks[4], (3, 3, out_c, out_c), f32),
        "b2": 0.1 * jax.random.normal(ks[5], (1, out_c), f32),
        "g2": 1.0 + 0.1 * jax.random.normal(ks[6], (1, out_c), f32),
        "be2": 0.1 * jax.random.normal(ks[7], (1, out_c), f32),
        # shortcut conv: 1x1, in_c -> out_c + bias
        "ws": 0.2 * jax.random.normal(ks[8], (in_c, out_c), f32),
        "bs": 0.1 * jax.random.normal(ks[9], (1, out_c), f32),
        "gs": 1.0 + 0.1 * jax.random.normal(ks[10], (1, out_c), f32),
        "bes": 0.1 * jax.random.normal(ks[11], (1, out_c), f32),
    }

    # module-convention NCHW input, transposed to the kernel's NHWC layout
    x_nchw = jax.random.normal(ks[12], (N, in_c, H, W), f32)
    x_nhwc = jnp.transpose(x_nchw, (0, 2, 3, 1))

    packed = pack_params(params, W)                 # one-time, host-side repack
    out = residual_block(x_nhwc, packed, images_per_block=1)
    out = jax.block_until_ready(out)

    ref = residual_block_ref(x_nhwc, params)
    assert out.shape == (N, H, W, out_c)
    # tolerance 2e-2: the kernel feeds the MXU bf16 operands (f32 accumulation) and
    # DMAs x as bf16; the f32 reference does not quantize.
    assert jnp.allclose(out, ref, rtol=2e-2, atol=2e-2), float(jnp.max(jnp.abs(out - ref)))

    print("KERNEL_OK")
</pallas_src>

<mosaic_0001>
module attributes {stable_mosaic.version = 11 : i64} {
  func.func @_stage1_kernel(%arg0: i32, %arg1: memref<16x64xbf16, #tpu.memory_space<vmem>>, %arg2: memref<64x512xbf16, #tpu.memory_space<vmem>>, %arg3: memref<16x128xf32, #tpu.memory_space<vmem>>, %arg4: memref<16x128xf32, #tpu.memory_space<vmem>>, %arg5: memref<1x1x512xf32, #tpu.memory_space<vmem>>) attributes {dimension_semantics = [#tpu.dimension_semantics<parallel>], iteration_bounds = array<i64: 2>, scalar_prefetch = 0 : i64, scratch_operands = 0 : i64, tpu.core_type = #tpu.core_type<tc>, window_params = [{transform_indices = @transform_0, window_bounds = array<i64: 16, 64>}, {pipeline_mode = #tpu.pipeline_mode<synchronous>, transform_indices = @transform_1, window_bounds = array<i64: 64, 512>}, {transform_indices = @transform_2, window_bounds = array<i64: 16, 128>}, {transform_indices = @transform_3, window_bounds = array<i64: 16, 128>}, {transform_indices = @transform_4, window_bounds = array<i64: 1, 1, 512>}]} {
    %c0 = arith.constant 0 : index
    %c0_0 = arith.constant 0 : index
    %0 = vector.load %arg1[%c0, %c0_0] : memref<16x64xbf16, #tpu.memory_space<vmem>>, vector<16x64xbf16>
    %c0_1 = arith.constant 0 : index
    %c0_2 = arith.constant 0 : index
    %1 = vector.load %arg2[%c0_1, %c0_2] : memref<64x512xbf16, #tpu.memory_space<vmem>>, vector<64x512xbf16>
    %cst = arith.constant dense<0.000000e+00> : vector<16x512xf32>
    %2 = tpu.matmul %0, %1, %cst {dimension_numbers = #tpu.dot_dimension_numbers<[1], [0], [0], [1], [0, 0, 1, 1], [], []>} : vector<16x64xbf16>, vector<64x512xbf16>, vector<16x512xf32> -> vector<16x512xf32>
    %3 = vector.extract_strided_slice %2 {offsets = [0, 0], sizes = [16, 128], strides = [1, 1]} : vector<16x512xf32> to vector<16x128xf32>
    %4 = vector.extract_strided_slice %2 {offsets = [0, 128], sizes = [16, 128], strides = [1, 1]} : vector<16x512xf32> to vector<16x128xf32>
    %5 = vector.extract_strided_slice %2 {offsets = [0, 256], sizes = [16, 128], strides = [1, 1]} : vector<16x512xf32> to vector<16x128xf32>
    %6 = vector.extract_strided_slice %2 {offsets = [0, 384], sizes = [16, 128], strides = [1, 1]} : vector<16x512xf32> to vector<16x128xf32>
    %7 = tpu.iota {dimensions = array<i32: 0>} : vector<16x1xi32>
    %c16_i32 = arith.constant 16 : i32
    %c0_i32 = arith.constant 0 : i32
    %8 = arith.cmpi eq, %c16_i32, %c0_i32 : i32
    %c1_i32 = arith.constant 1 : i32
    %9 = arith.select %8, %c1_i32, %c16_i32 : i32
    %10 = vector.broadcast %9 : i32 to vector<16x1xi32>
    %11 = arith.remsi %7, %10 : vector<16x1xi32>
    %c0_i32_3 = arith.constant 0 : i32
    %12 = vector.broadcast %c0_i32_3 : i32 to vector<16x1xi32>
    %13 = arith.cmpi ne, %11, %12 : vector<16x1xi32>
    %c0_i32_4 = arith.constant 0 : i32
    %14 = vector.broadcast %c0_i32_4 : i32 to vector<16x1xi32>
    %15 = arith.cmpi slt, %11, %14 : vector<16x1xi32>
    %c0_i32_5 = arith.constant 0 : i32
    %16 = arith.cmpi slt, %9, %c0_i32_5 : i32
    %17 = vector.broadcast %16 : i1 to vector<16x1xi1>
    %18 = vector.broadcast %17 : vector<16x1xi1> to vector<16x1xi1>
    %19 = arith.xori %15, %18 : vector<16x1xi1>
    %20 = arith.andi %19, %13 : vector<16x1xi1>
    %21 = vector.broadcast %9 : i32 to vector<16x1xi32>
    %22 = arith.addi %11, %21 : vector<16x1xi32>
    %23 = arith.select %20, %22, %11 : vector<16x1xi1>, vector<16x1xi32>
    %c0_i32_6 = arith.constant 0 : i32
    %24 = vector.broadcast %c0_i32_6 : i32 to vector<16x1xi32>
    %25 = arith.cmpi sgt, %23, %24 : vector<16x1xi32>
    %c1_i32_7 = arith.constant 1 : i32
    %26 = tpu.dynamic_rotate %3 by %c1_i32_7 dim 0 : vector<16x128xf32>, i32 -> vector<16x128xf32>
    %cst_8 = arith.constant 0.000000e+00 : f32
    %27 = vector.shape_cast %25 : vector<16x1xi1> to vector<16x1xi1>
    %28 = vector.broadcast %27 : vector<16x1xi1> to vector<16x128xi1>
    %29 = vector.broadcast %cst_8 : f32 to vector<16x128xf32>
    %30 = arith.select %28, %26, %29 : vector<16x128xi1>, vector<16x128xf32>
    %31 = arith.addf %4, %30 : vector<16x128xf32>
    %c15_i32 = arith.constant 15 : i32
    %32 = vector.broadcast %c15_i32 : i32 to vector<16x1xi32>
    %33 = arith.cmpi slt, %23, %32 : vector<16x1xi32>
    %c15_i32_9 = arith.constant 15 : i32
    %34 = tpu.dynamic_rotate %5 by %c15_i32_9 dim 0 : vector<16x128xf32>, i32 -> vector<16x128xf32>
    %cst_10 = arith.constant 0.000000e+00 : f32
    %35 = vector.shape_cast %33 : vector<16x1xi1> to vector<16x1xi1>
    %36 = vector.broadcast %35 : vector<16x1xi1> to vector<16x128xi1>
    %37 = vector.broadcast %cst_10 : f32 to vector<16x128xf32>
    %38 = arith.select %36, %34, %37 : vector<16x128xi1>, vector<16x128xf32>
    %39 = arith.addf %31, %38 : vector<16x128xf32>
    %c0_11 = arith.constant 0 : index
    %c0_12 = arith.constant 0 : index
    %40 = vector.load %arg3[%c0_11, %c0_12] : memref<16x128xf32, #tpu.memory_space<vmem>>, vector<16x128xf32>
    tpu.vector_store %arg3[%c0_11, %c0_12], %39 {strides = array<i32>} : memref<16x128xf32, #tpu.memory_space<vmem>>, vector<16x128xf32>,
    %c0_13 = arith.constant 0 : index
    %c0_14 = arith.constant 0 : index
    %41 = vector.load %arg4[%c0_13, %c0_14] : memref<16x128xf32, #tpu.memory_space<vmem>>, vector<16x128xf32>
    tpu.vector_store %arg4[%c0_13, %c0_14], %6 {strides = array<i32>} : memref<16x128xf32, #tpu.memory_space<vmem>>, vector<16x128xf32>,
    %cst_15 = arith.constant dense<0.000000e+00> : vector<128xf32>
    %42 = vector.multi_reduction <add>, %39, %cst_15 [0] : vector<16x128xf32> to vector<128xf32>
    %43 = vector.shape_cast %42 : vector<128xf32> to vector<1x128xf32>
    %44 = arith.mulf %39, %39 : vector<16x128xf32>
    %cst_16 = arith.constant dense<0.000000e+00> : vector<128xf32>
    %45 = vector.multi_reduction <add>, %44, %cst_16 [0] : vector<16x128xf32> to vector<128xf32>
    %46 = vector.shape_cast %45 : vector<128xf32> to vector<1x128xf32>
    %cst_17 = arith.constant dense<0.000000e+00> : vector<128xf32>
    %47 = vector.multi_reduction <add>, %6, %cst_17 [0] : vector<16x128xf32> to vector<128xf32>
    %48 = vector.shape_cast %47 : vector<128xf32> to vector<1x128xf32>
    %49 = arith.mulf %6, %6 : vector<16x128xf32>
    %cst_18 = arith.constant dense<0.000000e+00> : vector<128xf32>
    %50 = vector.multi_reduction <add>, %49, %cst_18 [0] : vector<16x128xf32> to vector<128xf32>
    %51 = vector.shape_cast %50 : vector<128xf32> to vector<1x128xf32>
    %52 = tpu.concatenate %43, %46, %48, %51 in 1 : vector<1x128xf32>, vector<1x128xf32>, vector<1x128xf32>, vector<1x128xf32> -> vector<1x512xf32>
    %53 = vector.shape_cast %52 : vector<1x512xf32> to vector<1x1x512xf32>
    %c0_19 = arith.constant 0 : index
    %c0_20 = arith.constant 0 : index
    %c0_21 = arith.constant 0 : index
    %54 = vector.load %arg5[%c0_19, %c0_20, %c0_21] : memref<1x1x512xf32, #tpu.memory_space<vmem>>, vector<1x1x512xf32>
    tpu.vector_store %arg5[%c0_19, %c0_20, %c0_21], %53 {strides = array<i32>} : memref<1x1x512xf32, #tpu.memory_space<vmem>>, vector<1x1x512xf32>,
    return
  }
  func.func @transform_0(%arg0: i32) -> (i32, i32) {
    %c0_i32 = arith.constant 0 : i32
    %c0_i32_0 = arith.constant 0 : i32
    return %arg0, %c0_i32 : i32, i32
  }
  func.func @transform_1(%arg0: i32) -> (i32, i32) {
    %c0_i32 = arith.constant 0 : i32
    %c0_i32_0 = arith.constant 0 : i32
    %c0_i32_1 = arith.constant 0 : i32
    return %c0_i32, %c0_i32_0 : i32, i32
  }
  func.func @transform_2(%arg0: i32) -> (i32, i32) {
    %c0_i32 = arith.constant 0 : i32
    %c0_i32_0 = arith.constant 0 : i32
    return %arg0, %c0_i32 : i32, i32
  }
  func.func @transform_3(%arg0: i32) -> (i32, i32) {
    %c0_i32 = arith.constant 0 : i32
    %c0_i32_0 = arith.constant 0 : i32
    return %arg0, %c0_i32 : i32, i32
  }
  func.func @transform_4(%arg0: i32) -> (i32, i32, i32) {
    %c0_i32 = arith.constant 0 : i32
    %c0_i32_0 = arith.constant 0 : i32
    %c0_i32_1 = arith.constant 0 : i32
    return %arg0, %c0_i32, %c0_i32_0 : i32, i32, i32
  }
}

</mosaic_0001>

<llo_original>
// kernel: tpu_custom_call.1
$region0: #{tpu_custom_call.1}
  #allocation0 [shape = 'u32[]', space=smem, size = 0x4, offset = 0x4, fixed_abs, tag = 'smem constant byte address 0x4 - core index']
  #allocation1 [shape = 'u32[72,128]{1,0:T(1,128)}', space=vmem, size = 0x9000, scoped, tag = 'internal scratch']
  %s0 = inlined_call_operand.hbm [shape: bf16[32,64], index: 0, kind: input, shape index: {}]
  %s1 = inlined_call_operand.hbm [shape: bf16[64,512], index: 1, kind: input, shape index: {}]
  %s2 = inlined_call_operand.hbm [shape: f32[32,128], index: 2, kind: output, shape index: {0}]
  %s3 = inlined_call_operand.hbm [shape: f32[32,128], index: 3, kind: output, shape index: {1}]
  %s4 = inlined_call_operand.hbm [shape: f32[2,1,512], index: 4, kind: output, shape index: {2}]
  %5 = xla_tuple %s2, %s3, %s4
  %s6 = sld [smem:[#allocation0]]
  $region65: #{tpu_custom_call.1} parent=0
    _
  %s8 = ssub.s32 1, %s6
  %s9 = scalar_select 0, %s8, %s6
  $region1: #{tpu_custom_call.1} parent=0
    #allocation2 [shape = 'u8[8192]{0}', space=vmem, size = 0x2000, scoped, tag = 'input window, operand 0']
    #allocation3 [shape = 's32[2]{0}', space=sflag, size = 0x8, scoped, tag = 'scoped memory for tpu_custom_call.1']
    #allocation4 [shape = 's32[2]{0}', space=sflag, size = 0x8, scoped, tag = 'scoped memory for tpu_custom_call.1']
    #allocation5 [shape = 'u8[65536]{0}', space=vmem, size = 0x10000, scoped, tag = 'input window, operand 1, single buffered']
    #allocation6 [shape = 's32[1]{0}', space=sflag, size = 0x4, scoped, tag = 'scoped memory for tpu_custom_call.1']
    #allocation7 [shape = 'u8[16384]{0}', space=vmem, size = 0x4000, scoped, tag = 'output window, operand 0']
    #allocation8 [shape = 'u8[16384]{0}', space=vmem, size = 0x4000, scoped, tag = 'output window, operand 1']
    #allocation9 [shape = 's32[2]{0}', space=sflag, size = 0x8, scoped, tag = 'scoped memory for tpu_custom_call.1']
    #allocation10 [shape = 'u8[4096]{0}', space=vmem, size = 0x1000, scoped, tag = 'output window, operand 2']
    %10 = vsyncpa [#allocation3], 0
    %s11 = scalar_lea.sflag [#allocation3], 1
    %12 = vsyncpa %s11, 0
    %13 = vsyncpa [#allocation6], 0
    %14 = vsyncpa [#allocation4], 0
    %s15 = scalar_lea.sflag [#allocation4], 1
    %16 = vsyncpa %s15, 0
    %17 = vsyncpa [#allocation9], 0
    %s18 = scalar_lea.sflag [#allocation9], 1
    %19 = vsyncpa %s18, 0
    loop: start=0, step=1, limit=4
    $region2: #{tpu_custom_call.1} parent=1 // loop_pre_header
      _
    $region3: #{tpu_custom_call.1} parent=1 // loop_header
      %s21 = sphi 0, %s25
      %p22 = scmp.ge.s32.totalorder %s21, 4
      %s31 = sphi 0, %s33
      %s34 = sphi 0, %s31
      %s35 = sphi 0, %s34
      %s51 = sphi 0, %s35
      %s55 = sphi 0, %s55
      %s57 = sphi 0, %s55
      %s58 = sphi 0, %s57
      %s72 = sphi 0, %s58
      %s78 = sphi 0, %s80
      %s81 = sphi 0, %s78
      %s82 = sphi 0, %s81
      %s98 = sphi 0, %s82
      %s104 = sphi 0, %s106
      %s107 = sphi 0, %s104
      %s108 = sphi 0, %s107
      %s124 = sphi 0, %s108
      %s130 = sphi 0, %s132
      %s133 = sphi 0, %s130
      %s134 = sphi 0, %s133
      %s150 = sphi 0, %s134
    $region4: #{tpu_custom_call.1} parent=1 // loop_header_branch
      %24 = sbr.rel (%p22) target = $region8
    $region5: #{tpu_custom_call.1} parent=1 // loop_body
      %s26 = ssub.s32 %s21, 1
      %s27 = ssub.s32 %s21, 2
      %s28 = sadd.s32 %s21, 1
      %s29 = ssub.s32 %s21, %s28
      %p30 = scmp.eq.s32.totalorder %s29, 0
      %s32 = sadd.s32 %s31, 1
      %s33 = scalar_select %p30, %s31, %s32
      %p36 = pneg %p30
      %p37 = scmp.eq.s32.totalorder %s21, 1
      %p38 = por %p36, %p37
      %p39 = scmp.ne.s32.totalorder %s31, %s34
      %p40 = scmp.eq.s32.totalorder %s21, 0
      %p41 = por %p39, %p40
      %p42 = scmp.ne.s32.totalorder %s31, %s34
      %p43 = scmp.eq.s32.totalorder %s26, 1
      %p44 = por %p42, %p43
      %p45 = scmp.ne.s32.totalorder %s34, %s35
      %p46 = scmp.eq.s32.totalorder %s26, 0
      %p47 = por %p45, %p46
      %p48 = scmp.ne.s32.totalorder %s34, %s35
      %p49 = scmp.eq.s32.totalorder %s27, 1
      %p50 = por %p48, %p49
      %p52 = scmp.ne.s32.totalorder %s35, %s51
      %p53 = scmp.eq.s32.totalorder %s27, 0
      %p54 = por %p52, %p53
      %s56 = sadd.s32 %s55, 1
      %p59 = scmp.eq.s32.totalorder %s21, 1
      %p60 = scmp.ne.s32.totalorder %s55, %s57
      %p61 = scmp.eq.s32.totalorder %s21, 0
      %p62 = por %p60, %p61
      %p63 = scmp.ne.s32.totalorder %s55, %s57
      %p64 = scmp.eq.s32.totalorder %s26, 1
      %p65 = por %p63, %p64
      %p66 = scmp.ne.s32.totalorder %s57, %s58
      %p67 = scmp.eq.s32.totalorder %s26, 0
      %p68 = por %p66, %p67
      %p69 = scmp.ne.s32.totalorder %s57, %s58
      %p70 = scmp.eq.s32.totalorder %s27, 1
      %p71 = por %p69, %p70
      %p73 = scmp.ne.s32.totalorder %s58, %s72
      %p74 = scmp.eq.s32.totalorder %s27, 0
      %p75 = por %p73, %p74
      %s76 = ssub.s32 %s21, %s28
      %p77 = scmp.eq.s32.totalorder %s76, 0
      %s79 = sadd.s32 %s78, 1
      %s80 = scalar_select %p77, %s78, %s79
      %p83 = pneg %p77
      %p84 = scmp.eq.s32.totalorder %s21, 1
      %p85 = por %p83, %p84
      %p86 = scmp.ne.s32.totalorder %s78, %s81
      %p87 = scmp.eq.s32.totalorder %s21, 0
      %p88 = por %p86, %p87
      %p89 = scmp.ne.s32.totalorder %s78, %s81
      %p90 = scmp.eq.s32.totalorder %s26, 1
      %p91 = por %p89, %p90
      %p92 = scmp.ne.s32.totalorder %s81, %s82
      %p93 = scmp.eq.s32.totalorder %s26, 0
      %p94 = por %p92, %p93
      %p95 = scmp.ne.s32.totalorder %s81, %s82
      %p96 = scmp.eq.s32.totalorder %s27, 1
      %p97 = por %p95, %p96
      %p99 = scmp.ne.s32.totalorder %s82, %s98
      %p100 = scmp.eq.s32.totalorder %s27, 0
      %p101 = por %p99, %p100
      %s102 = ssub.s32 %s21, %s28
      %p103 = scmp.eq.s32.totalorder %s102, 0
      %s105 = sadd.s32 %s104, 1
      %s106 = scalar_select %p103, %s104, %s105
      %p109 = pneg %p103
      %p110 = scmp.eq.s32.totalorder %s21, 1
      %p111 = por %p109, %p110
      %p112 = scmp.ne.s32.totalorder %s104, %s107
      %p113 = scmp.eq.s32.totalorder %s21, 0
      %p114 = por %p112, %p113
      %p115 = scmp.ne.s32.totalorder %s104, %s107
      %p116 = scmp.eq.s32.totalorder %s26, 1
      %p117 = por %p115, %p116
      %p118 = scmp.ne.s32.totalorder %s107, %s108
      %p119 = scmp.eq.s32.totalorder %s26, 0
      %p120 = por %p118, %p119
      %p121 = scmp.ne.s32.totalorder %s107, %s108
      %p122 = scmp.eq.s32.totalorder %s27, 1
      %p123 = por %p121, %p122
      %p125 = scmp.ne.s32.totalorder %s108, %s124
      %p126 = scmp.eq.s32.totalorder %s27, 0
      %p127 = por %p125, %p126
      %s128 = ssub.s32 %s21, %s28
      %p129 = scmp.eq.s32.totalorder %s128, 0
      %s131 = sadd.s32 %s130, 1
      %s132 = scalar_select %p129, %s130, %s131
      %p135 = pneg %p129
      %p136 = scmp.eq.s32.totalorder %s21, 1
      %p137 = por %p135, %p136
      %p138 = scmp.ne.s32.totalorder %s130, %s133
      %p139 = scmp.eq.s32.totalorder %s21, 0
      %p140 = por %p138, %p139
      %p141 = scmp.ne.s32.totalorder %s130, %s133
      %p142 = scmp.eq.s32.totalorder %s26, 1
      %p143 = por %p141, %p142
      %p144 = scmp.ne.s32.totalorder %s133, %s134
      %p145 = scmp.eq.s32.totalorder %s26, 0
      %p146 = por %p144, %p145
      %p147 = scmp.ne.s32.totalorder %s133, %s134
      %p148 = scmp.eq.s32.totalorder %s27, 1
      %p149 = por %p147, %p148
      %p151 = scmp.ne.s32.totalorder %s134, %s150
      %p152 = scmp.eq.s32.totalorder %s27, 0
      %p153 = por %p151, %p152
      %p154 = scmp.le.s32.totalorder 1, %s21
      %p155 = scmp.lt.s32.totalorder %s21, 3
      %p156 = pnand %p154, %p155
      %p157 = pneg %p156
      // Predicated region
      $region9: #{tpu_custom_call.1} parent=5 // pred_check
        _
      $region10: #{tpu_custom_call.1} parent=5 // pred_check_branch
        %159 = sbr.rel (%p156) target = $region12
      $region11: #{tpu_custom_call.1} parent=5 // pred_region
        %s160 = ssub.s32 %s21, 1
        // Predicated region
        $region13: #{tpu_custom_call.1} parent=11 // pred_check
          %p161 = pneg %p68
        $region14: #{tpu_custom_call.1} parent=11 // pred_check_branch
          %163 = sbr.rel (%p161) target = $region16
        $region15: #{tpu_custom_call.1} parent=11 // pred_region
          %165 = vsyncadd [#allocation6], 0
          %s166 = sshll.u32 %s1, 4
          %s167 = int_to_ptr.hbm [resolvable:$true] %s166
          %s168 = sshll.u32 [#allocation5], 4
          %s169 = int_to_ptr.vmem [resolvable:$true] %s168
          %174 = dma.hbm_to_vmem [thread:$0]  %s167, 2048, %s169, [#allocation6], 256, 256, 16
        $region16: #{tpu_custom_call.1} parent=11 // pred_fallthru
          _
      $region12: #{tpu_custom_call.1} parent=5 // pred_fallthru
        _
      %p175 = scmp.lt.s32.totalorder %s21, 2
      // Predicated region
      $region17: #{tpu_custom_call.1} parent=5 // pred_check
        %p176 = pneg %p175
      $region18: #{tpu_custom_call.1} parent=5 // pred_check_branch
        %178 = sbr.rel (%p176) target = $region20
      $region19: #{tpu_custom_call.1} parent=5 // pred_region
        // Predicated region
        $region21: #{tpu_custom_call.1} parent=19 // pred_check
          %p179 = pneg %p41
        $region22: #{tpu_custom_call.1} parent=19 // pred_check_branch
          %181 = sbr.rel (%p179) target = $region24
        $region23: #{tpu_custom_call.1} parent=19 // pred_region
          %s182 = sand.u32 %s31, 1
          %s183 = scalar_lea.sflag [#allocation3], %s182
          %s184 = sand.u32 %s31, 1
          %s185 = smul.addr %s184, 8
          %s186 = scalar_lea.vmem [#allocation2], %s185
          %s187 = smul.u32 2, %s21
          %189 = vsyncadd %s183, 0
          %s190 = smul.addr %s187, 4
          %s191 = scalar_lea.hbm %s0, %s190
          %s192 = sshll.u32 %s191, 4
          %s193 = int_to_ptr.hbm [resolvable:$true] %s192
          %s194 = sshll.u32 %s186, 4
          %s195 = int_to_ptr.vmem [resolvable:$true] %s194
          %200 = dma.hbm_to_vmem [thread:$0]  %s193, 128, %s195, %s183, 64, 64, 4
        $region24: #{tpu_custom_call.1} parent=19 // pred_fallthru
          _
      $region20: #{tpu_custom_call.1} parent=5 // pred_fallthru
        _
      %p201 = scmp.le.s32.totalorder 1, %s21
      %p202 = scmp.lt.s32.totalorder %s21, 3
      %p203 = pnand %p201, %p202
      %p204 = pneg %p203
      // Predicated region
      $region25: #{tpu_custom_call.1} parent=5 // pred_check
        _
      $region26: #{tpu_custom_call.1} parent=5 // pred_check_branch
        %206 = sbr.rel (%p203) target = $region28
      $region27: #{tpu_custom_call.1} parent=5 // pred_region
        %s207 = ssub.s32 %s21, 1
        %s208 = sand.u32 %s34, 1
        %s209 = scalar_lea.sflag [#allocation3], %s208
        %s210 = sand.u32 %s34, 1
        %s211 = smul.addr %s210, 8
        %s212 = scalar_lea.vmem [#allocation2], %s211
        // Predicated region
        $region29: #{tpu_custom_call.1} parent=27 // pred_check
          %p213 = pneg %p47
        $region30: #{tpu_custom_call.1} parent=27 // pred_check_branch
          %215 = sbr.rel (%p213) target = $region32
        $region31: #{tpu_custom_call.1} parent=27 // pred_region
          %217 = dma.done %s209, 128
        $region32: #{tpu_custom_call.1} parent=27 // pred_fallthru
          _
        // Predicated region
        $region33: #{tpu_custom_call.1} parent=27 // pred_check
          %p218 = pneg %p68
        $region34: #{tpu_custom_call.1} parent=27 // pred_check_branch
          %220 = sbr.rel (%p218) target = $region36
        $region35: #{tpu_custom_call.1} parent=27 // pred_region
          %222 = dma.done [#allocation6], 2048
        $region36: #{tpu_custom_call.1} parent=27 // pred_fallthru
          _
        %s223 = sand.u32 %s34, 1
        %s224 = scalar_lea.sflag [#allocation3], %s223
        %s225 = sand.u32 %s34, 1
        %s226 = smul.addr %s225, 8
        %s227 = scalar_lea.vmem [#allocation2], %s226
        %p228 = pneg %p47
        %p229 = pneg %p44
        %p230 = pneg %p68
        %p231 = pneg %p65
        %p232 = pneg %p94
        %p233 = pneg %p91
        %s234 = sand.u32 %s81, 1
        %s235 = scalar_lea.sflag [#allocation4], %s234
        %s236 = sand.u32 %s81, 1
        %s237 = smul.addr %s236, 16
        %s238 = scalar_lea.vmem [#allocation7], %s237
        %p239 = pneg %p120
        %p240 = pneg %p117
        %s241 = sand.u32 %s26, 1
        %s242 = scalar_lea.sflag [#allocation9], %s241
        %s243 = sand.u32 %s107, 1
        %s244 = smul.addr %s243, 16
        %s245 = scalar_lea.vmem [#allocation8], %s244
        %p246 = pneg %p146
        %p247 = pneg %p143
        %s248 = sand.u32 %s26, 1
        %s249 = scalar_lea.sflag [#allocation9], %s248
        %s250 = sand.u32 %s133, 1
        %s251 = smul.addr %s250, 4
        %s252 = scalar_lea.vmem [#allocation10], %s251
        %s253 = smul.u32 2, %s26
        %s254 = smul.u32 2, %s26
        %s255 = smul.u32 2, %s26
        %v257 = vld [vmem:[%s212] sm:$0xf]
        %v258 = vld [vmem:[%s212 + $0x4] sm:$0xf]
        %v259 = vld [vmem:[#allocation5] sm:$0xff]
        %v260 = vld [vmem:[#allocation5 + $0x8] sm:$0xff]
        %v261 = vld [vmem:[#allocation5 + $0x10] sm:$0xff]
        %v262 = vld [vmem:[#allocation5 + $0x18] sm:$0xff]
        %v263 = vld [vmem:[#allocation5 + $0x20] sm:$0xff]
        %v264 = vld [vmem:[#allocation5 + $0x28] sm:$0xff]
        %v265 = vld [vmem:[#allocation5 + $0x30] sm:$0xff]
        %v266 = vld [vmem:[#allocation5 + $0x38] sm:$0xff]
        %v267 = vld [vmem:[#allocation5 + $0x40] sm:$0xff]
        %v268 = vld [vmem:[#allocation5 + $0x48] sm:$0xff]
        %v269 = vld [vmem:[#allocation5 + $0x50] sm:$0xff]
        %v270 = vld [vmem:[#allocation5 + $0x58] sm:$0xff]
        %v271 = vld [vmem:[#allocation5 + $0x60] sm:$0xff]
        %v272 = vld [vmem:[#allocation5 + $0x68] sm:$0xff]
        %v273 = vld [vmem:[#allocation5 + $0x70] sm:$0xff]
        %v274 = vld [vmem:[#allocation5 + $0x78] sm:$0xff]
        %v277 = vunpack.c.l.b16 %v257
        %v278 = vunpack.c.l.b16 %v258
        %v279 = vpack.c.b16 %v278, %v277
        %v296 = vunpack.c.l.b16 %v259
        %v297 = vunpack.c.h.b16 %v259
        %v298 = vunpack.c.l.b16 %v260
        %v299 = vunpack.c.h.b16 %v260
        %v300 = vunpack.c.l.b16 %v261
        %v301 = vunpack.c.h.b16 %v261
        %v302 = vunpack.c.l.b16 %v262
        %v303 = vunpack.c.h.b16 %v262
        %v304 = vunpack.c.l.b16 %v263
        %v305 = vunpack.c.h.b16 %v263
        %v306 = vunpack.c.l.b16 %v264
        %v307 = vunpack.c.h.b16 %v264
        %v308 = vunpack.c.l.b16 %v265
        %v309 = vunpack.c.h.b16 %v265
        %v310 = vunpack.c.l.b16 %v266
        %v311 = vunpack.c.h.b16 %v266
        %v312 = vunpack.c.l.b16 %v267
        %v313 = vunpack.c.h.b16 %v267
        %v314 = vunpack.c.l.b16 %v268
        %v315 = vunpack.c.h.b16 %v268
        %v316 = vunpack.c.l.b16 %v269
        %v317 = vunpack.c.h.b16 %v269
        %v318 = vunpack.c.l.b16 %v270
        %v319 = vunpack.c.h.b16 %v270
        %v320 = vunpack.c.l.b16 %v271
        %v321 = vunpack.c.h.b16 %v271
        %v322 = vunpack.c.l.b16 %v272
        %v323 = vunpack.c.h.b16 %v272
        %v324 = vunpack.c.l.b16 %v273
        %v325 = vunpack.c.h.b16 %v273
        %v326 = vunpack.c.l.b16 %v274
        %v327 = vunpack.c.h.b16 %v274
        %v328 = vpack.c.b16 %v300, %v296
        %v329 = vpack.c.b16 %v301, %v297
        %v330 = vpack.c.b16 %v302, %v298
        %v331 = vpack.c.b16 %v303, %v299
        %v332 = vpack.c.b16 %v308, %v304
        %v333 = vpack.c.b16 %v309, %v305
        %v334 = vpack.c.b16 %v310, %v306
        %v335 = vpack.c.b16 %v311, %v307
        %v336 = vpack.c.b16 %v316, %v312
        %v337 = vpack.c.b16 %v317, %v313
        %v338 = vpack.c.b16 %v318, %v314
        %v339 = vpack.c.b16 %v319, %v315
        %v340 = vpack.c.b16 %v324, %v320
        %v341 = vpack.c.b16 %v325, %v321
        %v342 = vpack.c.b16 %v326, %v322
        %v343 = vpack.c.b16 %v327, %v323
        %vm360 = vcmask 523264
        %v362 = vsel %vm360, %v279, 0
        %364 = vmatpush.bf16.msra.mxu0 0
        %365 = vmatpush.bf16.msra.mxu0 0
        %366 = vmatpush.bf16.msra.mxu0 0
        %367 = vmatpush.bf16.msra.mxu0 0
        %368 = vmatpush.bf16.msra.mxu0 %v340
        %369 = vmatpush.bf16.msra.mxu0 %v336
        %370 = vmatpush.bf16.msra.mxu0 %v332
        %371 = vmatpush.bf16.msra.mxu0 %v328
        %372 = vmatmul.bf16.gmra.mxu0 %v362
        %v373 = vpop.f32.mrf.mxu0
        %v374 = vadd.f32 0.0, %v373
        %v375 = vpop.f32.mrf.mxu0
        %v376 = vadd.f32 0.0, %v375
        %377 = vdwg.mxu0
        %378 = vmatpush.bf16.msra.mxu0 0
        %379 = vmatpush.bf16.msra.mxu0 0
        %380 = vmatpush.bf16.msra.mxu0 0
        %381 = vmatpush.bf16.msra.mxu0 0
        %382 = vmatpush.bf16.msra.mxu0 %v341
        %383 = vmatpush.bf16.msra.mxu0 %v337
        %384 = vmatpush.bf16.msra.mxu0 %v333
        %385 = vmatpush.bf16.msra.mxu0 %v329
        %386 = vmatmul.bf16.gmra.mxu0 %v362
        %v387 = vpop.f32.mrf.mxu0
        %v388 = vadd.f32 0.0, %v387
        %v389 = vpop.f32.mrf.mxu0
        %v390 = vadd.f32 0.0, %v389
        %391 = vdwg.mxu0
        %392 = vmatpush.bf16.msra.mxu0 0
        %393 = vmatpush.bf16.msra.mxu0 0
        %394 = vmatpush.bf16.msra.mxu0 0
        %395 = vmatpush.bf16.msra.mxu0 0
        %396 = vmatpush.bf16.msra.mxu0 %v342
        %397 = vmatpush.bf16.msra.mxu0 %v338
        %398 = vmatpush.bf16.msra.mxu0 %v334
        %399 = vmatpush.bf16.msra.mxu0 %v330
        %400 = vmatmul.bf16.gmra.mxu0 %v362
        %v401 = vpop.f32.mrf.mxu0
        %v402 = vadd.f32 0.0, %v401
        %v403 = vpop.f32.mrf.mxu0
        %v404 = vadd.f32 0.0, %v403
        %405 = vdwg.mxu0
        %406 = vmatpush.bf16.msra.mxu0 0
        %407 = vmatpush.bf16.msra.mxu0 0
        %408 = vmatpush.bf16.msra.mxu0 0
        %409 = vmatpush.bf16.msra.mxu0 0
        %410 = vmatpush.bf16.msra.mxu0 %v343
        %411 = vmatpush.bf16.msra.mxu0 %v339
        %412 = vmatpush.bf16.msra.mxu0 %v335
        %413 = vmatpush.bf16.msra.mxu0 %v331
        %414 = vmatmul.bf16.gmra.mxu0 %v362
        %v415 = vpop.f32.mrf.mxu0
        %v416 = vadd.f32 0.0, %v415
        %v417 = vpop.f32.mrf.mxu0
        %v418 = vadd.f32 0.0, %v417
        %419 = vdwg.mxu0
        %v420 = vlaneseq
        %v421 = vshrl.u32 %v420, 7
        %v422 = vadd.s32 %v421, 8
        %vm423 = vcmp.lt.s32.totalorder %v421, 0
        %v424 = vsub.s32 0, %v421
        %v425 = vsel %vm423, %v424, %v421
        %v426 = vshrl.u32 %v425, 4
        %v427 = vand.u32 %v425, 15
        %v428 = vsub.s32 0, %v427
        %v429 = vsel %vm423, %v428, %v427
        %vm430 = vcmp.lt.s32.totalorder %v422, 0
        %v431 = vsub.s32 0, %v422
        %v432 = vsel %vm430, %v431, %v422
        %v433 = vshrl.u32 %v432, 4
        %v434 = vand.u32 %v432, 15
        %v435 = vsub.s32 0, %v434
        %v436 = vsel %vm430, %v435, %v434
        %vm437 = vcmp.ne.s32.totalorder %v429, 0
        %vm438 = vcmp.ne.s32.totalorder %v436, 0
        %vm439 = vcmp.lt.s32.totalorder %v429, 0
        %vm440 = vcmp.lt.s32.totalorder %v436, 0
        %vm441 = vmand %vm439, %vm437
        %vm442 = vmand %vm440, %vm438
        %v443 = vadd.s32 %v429, 16
        %v444 = vadd.s32 %v436, 16
        %v445 = vsel %vm441, %v443, %v429
        %v446 = vsel %vm442, %v444, %v436
        %vm447 = vcmp.gt.s32.totalorder %v445, 0
        %vm448 = vcmp.gt.s32.totalorder %v446, 0
        %v449 = vrot.slane %v374, 7
        %v450 = vrot.slane %v376, 7
        %vm451 = vcmp.lt.s32.totalorder %v421, 1
        %v452 = vsel %vm451, %v449, %v450
        %v453 = vsel %vm451, %v450, %v449
        %v454 = vsel %vm447, 1, 0
        %v455 = vsel %vm448, 1, 0
        %vm456 = vcmp.eq.s32.totalorder %v454, 1
        %vm457 = vcmp.eq.s32.totalorder %v455, 1
        %v458 = vsel %vm456, %v453, 0.0
        %v459 = vsel %vm457, %v452, 0.0
        %v460 = vadd.f32 %v388, %v458
        %v461 = vadd.f32 %v390, %v459
        %vm462 = vcmp.lt.s32.totalorder %v445, 15
        %vm463 = vcmp.lt.s32.totalorder %v446, 15
        %v464 = vrot.slane %v402, 1
        %v465 = vrot.slane %v404, 1
        %vm466 = vcmp.lt.s32.totalorder %v421, 7
        %v467 = vsel %vm466, %v464, %v465
        %v468 = vsel %vm466, %v465, %v464
        %v469 = vsel %vm462, 1, 0
        %v470 = vsel %vm463, 1, 0
        %vm471 = vcmp.eq.s32.totalorder %v469, 1
        %vm472 = vcmp.eq.s32.totalorder %v470, 1
        %v473 = vsel %vm471, %v467, 0.0
        %v474 = vsel %vm472, %v468, 0.0
        %v475 = vadd.f32 %v460, %v473
        %v476 = vadd.f32 %v461, %v474
        %477 = vst [vmem:[%s238] sm:$0xff] %v475
        %478 = vst [vmem:[%s238 + $0x8] sm:$0xff] %v476
        %479 = vst [vmem:[%s245] sm:$0xff] %v416
        %480 = vst [vmem:[%s245 + $0x8] sm:$0xff] %v418
        %v481 = vadd.f32 %v475, %v476
        %v482 = vrot.slane %v481, 4
        %v483 = vadd.f32 %v481, %v482
        %v484 = vrot.slane %v483, 2
        %v485 = vadd.f32 %v483, %v484
        %v486 = vrot.slane %v485, 1
        %v487 = vadd.f32 %v485, %v486
        %v488 = vmul.f32 %v475, %v475
        %v489 = vmul.f32 %v476, %v476
        %v490 = vadd.f32 %v488, %v489
        %v491 = vrot.slane %v490, 4
        %v492 = vadd.f32 %v490, %v491
        %v493 = vrot.slane %v492, 2
        %v494 = vadd.f32 %v492, %v493
        %v495 = vrot.slane %v494, 1
        %v496 = vadd.f32 %v494, %v495
        %v497 = vadd.f32 %v416, %v418
        %v498 = vrot.slane %v497, 4
        %v499 = vadd.f32 %v497, %v498
        %v500 = vrot.slane %v499, 2
        %v501 = vadd.f32 %v499, %v500
        %v502 = vrot.slane %v501, 1
        %v503 = vadd.f32 %v501, %v502
        %v504 = vmul.f32 %v416, %v416
        %v505 = vmul.f32 %v418, %v418
        %v506 = vadd.f32 %v504, %v505
        %v507 = vrot.slane %v506, 4
        %v508 = vadd.f32 %v506, %v507
        %v509 = vrot.slane %v508, 2
        %v510 = vadd.f32 %v508, %v509
        %v511 = vrot.slane %v510, 1
        %v512 = vadd.f32 %v510, %v511
        %v517 = vrot.slane %v496, 7
        %v518 = vrot.slane %v503, 6
        %v519 = vrot.slane %v512, 5
        %vm520 = vcmask 1040384
        %v521 = vsel %vm520, %v487, %v517
        %vm522 = vcmask 1042434
        %v523 = vsel %vm522, %v518, %v519
        %vm524 = vcmask 1041408
        %v525 = vsel %vm524, %v521, %v523
        %v527 = vlaneseq
        %vm528 = vcmp.ge.s32.totalorder %v527, 0
        %vm529 = vcmp.lt.s32.totalorder %v527, 512
        %vm530 = vmand %vm528, %vm529
        %531 = vst.msk [vmem:[%s252] sm:$0xf] %vm530, %v525
        %s532 = sand.u32 %s81, 1
        %s533 = scalar_lea.sflag [#allocation4], %s532
        %s534 = sand.u32 %s81, 1
        %s535 = smul.addr %s534, 16
        %s536 = scalar_lea.vmem [#allocation7], %s535
        %s537 = sand.u32 %s26, 1
        %s538 = scalar_lea.sflag [#allocation9], %s537
        %s539 = sand.u32 %s107, 1
        %s540 = smul.addr %s539, 16
        %s541 = scalar_lea.vmem [#allocation8], %s540
        %s542 = sand.u32 %s26, 1
        %s543 = scalar_lea.sflag [#allocation9], %s542
        %s544 = sand.u32 %s133, 1
        %s545 = smul.addr %s544, 4
        %s546 = scalar_lea.vmem [#allocation10], %s545
        // Predicated region
        $region37: #{tpu_custom_call.1} parent=27 // pred_check
          %p547 = pneg %p91
        $region38: #{tpu_custom_call.1} parent=27 // pred_check_branch
          %549 = sbr.rel (%p547) target = $region40
        $region39: #{tpu_custom_call.1} parent=27 // pred_region
          %s550 = smul.u32 2, %s26
          %552 = vsyncadd %s533, 0
          %s553 = smul.addr %s550, 8
          %s554 = scalar_lea.hbm %s2, %s553
          %s555 = sshll.u32 %s536, 4
          %s556 = int_to_ptr.vmem [resolvable:$true] %s555
          %s557 = sshll.u32 %s554, 4
          %s558 = int_to_ptr.hbm [resolvable:$true] %s557
          %563 = dma.vmem_to_hbm [thread:$0]  %s556, 256, %s558, %s533, 128, 128, 8
        $region40: #{tpu_custom_call.1} parent=27 // pred_fallthru
          _
        // Predicated region
        $region41: #{tpu_custom_call.1} parent=27 // pred_check
          %p564 = pneg %p117
        $region42: #{tpu_custom_call.1} parent=27 // pred_check_branch
          %566 = sbr.rel (%p564) target = $region44
        $region43: #{tpu_custom_call.1} parent=27 // pred_region
          %s567 = smul.u32 2, %s26
          %569 = vsyncadd %s538, 0
          %s570 = smul.addr %s567, 8
          %s571 = scalar_lea.hbm %s3, %s570
          %s572 = sshll.u32 %s541, 4
          %s573 = int_to_ptr.vmem [resolvable:$true] %s572
          %s574 = sshll.u32 %s571, 4
          %s575 = int_to_ptr.hbm [resolvable:$true] %s574
          %580 = dma.vmem_to_hbm [thread:$0]  %s573, 256, %s575, %s538, 128, 128, 8
        $region44: #{tpu_custom_call.1} parent=27 // pred_fallthru
          _
        // Predicated region
        $region45: #{tpu_custom_call.1} parent=27 // pred_check
          %p581 = pneg %p143
        $region46: #{tpu_custom_call.1} parent=27 // pred_check_branch
          %583 = sbr.rel (%p581) target = $region48
        $region47: #{tpu_custom_call.1} parent=27 // pred_region
          %585 = vsyncadd %s543, 0
          %s586 = smul.addr %s26, 4
          %s587 = scalar_lea.hbm %s4, %s586
          %s589 = sshll.u32 %s546, 4
          %s590 = int_to_ptr.vmem [resolvable:$true] %s589
          %s591 = sshll.u32 %s587, 4
          %s592 = int_to_ptr.hbm [resolvable:$true] %s591
          %594 = dma.vmem_to_hbm [thread:$0]  %s590, 64, %s592, %s543
        $region48: #{tpu_custom_call.1} parent=27 // pred_fallthru
          _
      $region28: #{tpu_custom_call.1} parent=5 // pred_fallthru
        _
      %p595 = scmp.le.s32.totalorder 2, %s21
      // Predicated region
      $region49: #{tpu_custom_call.1} parent=5 // pred_check
        %p596 = pneg %p595
      $region50: #{tpu_custom_call.1} parent=5 // pred_check_branch
        %598 = sbr.rel (%p596) target = $region52
      $region51: #{tpu_custom_call.1} parent=5 // pred_region
        %s599 = ssub.s32 %s21, 2
        // Predicated region
        $region53: #{tpu_custom_call.1} parent=51 // pred_check
          %p600 = pneg %p97
        $region54: #{tpu_custom_call.1} parent=51 // pred_check_branch
          %602 = sbr.rel (%p600) target = $region56
        $region55: #{tpu_custom_call.1} parent=51 // pred_region
          %s603 = sand.u32 %s82, 1
          %s604 = scalar_lea.sflag [#allocation4], %s603
          %s605 = sand.u32 %s82, 1
          %s606 = smul.addr %s605, 16
          %s607 = scalar_lea.vmem [#allocation7], %s606
          %609 = dma.done %s604, 256
        $region56: #{tpu_custom_call.1} parent=51 // pred_fallthru
          _
        // Predicated region
        $region57: #{tpu_custom_call.1} parent=51 // pred_check
          %p610 = pneg %p123
        $region58: #{tpu_custom_call.1} parent=51 // pred_check_branch
          %612 = sbr.rel (%p610) target = $region60
        $region59: #{tpu_custom_call.1} parent=51 // pred_region
          %s613 = sand.u32 %s27, 1
          %s614 = scalar_lea.sflag [#allocation9], %s613
          %s615 = sand.u32 %s108, 1
          %s616 = smul.addr %s615, 16
          %s617 = scalar_lea.vmem [#allocation8], %s616
          %619 = dma.done %s614, 256
        $region60: #{tpu_custom_call.1} parent=51 // pred_fallthru
          _
        // Predicated region
        $region61: #{tpu_custom_call.1} parent=51 // pred_check
          %p620 = pneg %p149
        $region62: #{tpu_custom_call.1} parent=51 // pred_check_branch
          %622 = sbr.rel (%p620) target = $region64
        $region63: #{tpu_custom_call.1} parent=51 // pred_region
          %s623 = sand.u32 %s27, 1
          %s624 = scalar_lea.sflag [#allocation9], %s623
          %s625 = sand.u32 %s134, 1
          %s626 = smul.addr %s625, 4
          %s627 = scalar_lea.vmem [#allocation10], %s626
          %629 = dma.done %s624, 64
        $region64: #{tpu_custom_call.1} parent=51 // pred_fallthru
          _
      $region52: #{tpu_custom_call.1} parent=5 // pred_fallthru
        _
    $region6: #{tpu_custom_call.1} parent=1 // loop_footer
      %s25 = sadd.s32 1, %s21
    $region7: #{tpu_custom_call.1} parent=1 // loop_footer_branch
      %20 = sbr.rel target = $region3
    $region8: #{tpu_custom_call.1} parent=1 // loop_exit
      _
    %630 = vsyncpa [#allocation3], 1
    %s631 = scalar_lea.sflag [#allocation3], 1
    %632 = vsyncpa %s631, 1
    %633 = vsyncpa [#allocation6], 1
    %634 = vsyncpa [#allocation4], 1
    %s635 = scalar_lea.sflag [#allocation4], 1
    %636 = vsyncpa %s635, 1
    %637 = vsyncpa [#allocation9], 1
    %s638 = scalar_lea.sflag [#allocation9], 1
    %639 = vsyncpa %s638, 1

</llo_original>
